<compile_context>
chip_gen: v6e
topology: v6e:2x2x1
jax: 0.10.0
libtpu: 0.0.40
codegen_flags: <defaults>
</compile_context>

<pallas_src>
import functools

import jax
import jax.numpy as jnp
from jax import lax
from jax.experimental import pallas as pl
from jax.experimental.pallas import tpu as pltpu


def _i32(v):
    """Python int -> wrapped signed 32-bit literal."""
    v &= 0xFFFFFFFF
    return v - (1 << 32) if v >= (1 << 31) else v


_GOLD = _i32(0x9E3779B9)                 # golden-ratio increment
_M1 = _i32(0x85EBCA6B)                   # murmur3 fmix32 constants
_M2 = _i32(0xC2B2AE35)
_STREAMS = tuple(_i32((2 * k + 1) * 0x9E3779B9) for k in range(6))


def _lrs(x, k):
    """Logical right shift for int32 (arithmetic >> then mask the sign fill)."""
    return (x >> k) & jnp.int32((1 << (32 - k)) - 1)


def _fmix32(h):
    """murmur3 finalizer: 32-bit avalanche mix (wrapping int32 arithmetic)."""
    h = h ^ _lrs(h, 16)
    h = h * jnp.int32(_M1)
    h = h ^ _lrs(h, 13)
    h = h * jnp.int32(_M2)
    h = h ^ _lrs(h, 16)
    return h


def _gaussian_noise_kernel(seed_ref, x_ref, o_ref, *, sigma, tile_rows, width):
    shape = x_ref.shape
    seed = seed_ref[0]

    # Global element index of every element in this tile: counter-based RNG,
    # independent of tiling / megacore parallelism.
    r = lax.broadcasted_iota(jnp.int32, shape, 0)
    c = lax.broadcasted_iota(jnp.int32, shape, 1)
    row0 = pl.program_id(0) * tile_rows
    idx = (row0 + r) * jnp.int32(width) + c
    base = idx + seed * jnp.int32(_GOLD)

    # 6 hashes -> 12 x 16-bit uniforms -> sum-of-12 (Irwin-Hall) ~ N(0, 1).
    acc = jnp.zeros(shape, jnp.float32)
    for s in _STREAMS:
        h = _fmix32(base + jnp.int32(s))
        lo = (h & jnp.int32(0xFFFF)).astype(jnp.float32)
        hi = _lrs(h, 16).astype(jnp.float32)
        acc = acc + lo + hi
    noise = (acc + 6.0) * jnp.float32(1.0 / 65536.0) - jnp.float32(6.0)

    o_ref[...] = (x_ref[...].astype(jnp.float32)
                  + jnp.float32(sigma) * noise).astype(o_ref.dtype)


def gaussian_noise(x, *, sigma=0.0, training=True, seed=0):
    """Forward pass of GaussianNoise.  x: any shape (e.g. NCHW)."""
    if not training or sigma == 0.0:
        return x                          # identity: eval mode / sigma == 0

    orig_shape = x.shape
    dtype = x.dtype
    n = x.size
    x_flat = jnp.reshape(x, (-1,))

    # Lane-dense slab: pick the widest last dim (multiple of 128) that divides
    # n so the common case needs no padding / extra HBM traffic.
    width = None
    for w in (1024, 512, 256, 128):
        if n % w == 0:
            width = w
            break
    pad = 0
    if width is None:
        # Rare unaligned tail: pad the flat view up to an (8, 1024) multiple.
        width = 1024
        pad = (-n) % (8 * width)
        x_flat = jnp.pad(x_flat, (0, pad))
    rows = x_flat.size // width
    x2d = jnp.reshape(x_flat, (rows, width))

    # ~2 MiB blocks: big enough to approach the HBM roofline, small enough
    # that the double-buffered in+out footprint (~8 MiB) fits every
    # generation's scoped VMEM without vmem_limit hacks.
    itemsize = jnp.dtype(dtype).itemsize
    target_rows = max(8, (2 * 1024 * 1024) // (width * itemsize))
    if rows <= target_rows:
        tile_rows = rows                  # single full-extent block
    else:
        tile_rows = (target_rows // 8) * 8
    grid = pl.cdiv(rows, tile_rows)

    seed_arr = jnp.asarray([seed], dtype=jnp.int32)
    kernel = functools.partial(_gaussian_noise_kernel, sigma=float(sigma),
                               tile_rows=tile_rows, width=width)

    out2d = pl.pallas_call(
        kernel,
        out_shape=jax.ShapeDtypeStruct((rows, width), dtype),
        grid_spec=pltpu.PrefetchScalarGridSpec(
            num_scalar_prefetch=1,
            grid=(grid,),
            in_specs=[pl.BlockSpec((tile_rows, width), lambda i, seed: (i, 0))],
            out_specs=pl.BlockSpec((tile_rows, width), lambda i, seed: (i, 0)),
        ),
        compiler_params=pltpu.CompilerParams(
            dimension_semantics=("parallel",),
        ),
    )(seed_arr, x2d)

    out_flat = jnp.reshape(out2d, (-1,))
    if pad:
        out_flat = out_flat[:n]
    return jnp.reshape(out_flat, orig_shape)


if __name__ == "__main__":
    key = jax.random.PRNGKey(0)
    x = jax.random.normal(key, (2, 4, 16, 16), dtype=jnp.float32)  # NCHW
    sigma = 0.1

    # training=True path: x + sigma * N(0, 1)
    y_train = gaussian_noise(x, sigma=sigma, training=True, seed=42)
    y_train = jax.block_until_ready(y_train)
    assert y_train.shape == x.shape and y_train.dtype == x.dtype

    # Sanity: added noise should be nonzero, ~zero-mean, std ~= sigma.
    diff = y_train - x
    assert float(jnp.max(jnp.abs(diff))) > 0.0
    assert abs(float(jnp.std(diff)) - sigma) < 0.02
    assert abs(float(jnp.mean(diff))) < 0.02

    # Different seeds give different noise.
    y_other = gaussian_noise(x, sigma=sigma, training=True, seed=7)
    y_other = jax.block_until_ready(y_other)
    assert float(jnp.max(jnp.abs(y_other - y_train))) > 0.0

    # eval path: identity (no kernel launch).
    y_eval = gaussian_noise(x, sigma=sigma, training=False)
    y_eval = jax.block_until_ready(y_eval)
    assert bool(jnp.all(y_eval == x))

    print("KERNEL_OK")
</pallas_src>

<mosaic_0001>
module attributes {stable_mosaic.version = 11 : i64} {
  func.func @_gaussian_noise_kernel(%arg0: i32, %arg1: memref<1xi32, #tpu.memory_space<smem>>, %arg2: memref<2x1024xf32, #tpu.memory_space<vmem>>, %arg3: memref<2x1024xf32, #tpu.memory_space<vmem>>) attributes {dimension_semantics = [#tpu.dimension_semantics<parallel>], iteration_bounds = array<i64: 1>, scalar_prefetch = 1 : i64, scratch_operands = 0 : i64, tpu.core_type = #tpu.core_type<tc>, window_params = [{transform_indices = @transform_0, window_bounds = array<i64: 2, 1024>}, {transform_indices = @transform_1, window_bounds = array<i64: 2, 1024>}]} {
    %c0 = arith.constant 0 : index
    %0 = memref.load %arg1[%c0] : memref<1xi32, #tpu.memory_space<smem>>
    %1 = tpu.iota {dimensions = array<i32: 0>} : vector<2x1024xi32>
    %2 = tpu.iota {dimensions = array<i32: 1>} : vector<2x1024xi32>
    %c2_i32 = arith.constant 2 : i32
    %3 = arith.muli %arg0, %c2_i32 : i32
    %4 = vector.broadcast %3 : i32 to vector<2x1024xi32>
    %5 = arith.addi %4, %1 : vector<2x1024xi32>
    %c1024_i32 = arith.constant 1024 : i32
    %6 = vector.broadcast %c1024_i32 : i32 to vector<2x1024xi32>
    %7 = arith.muli %5, %6 : vector<2x1024xi32>
    %8 = arith.addi %7, %2 : vector<2x1024xi32>
    %c-1640531527_i32 = arith.constant -1640531527 : i32
    %9 = arith.muli %0, %c-1640531527_i32 : i32
    %10 = vector.broadcast %9 : i32 to vector<2x1024xi32>
    %11 = arith.addi %8, %10 : vector<2x1024xi32>
    %cst = arith.constant 0.000000e+00 : f32
    %12 = vector.broadcast %cst : f32 to vector<2x1024xf32>
    %c-1640531527_i32_0 = arith.constant -1640531527 : i32
    %13 = vector.broadcast %c-1640531527_i32_0 : i32 to vector<2x1024xi32>
    %14 = arith.addi %11, %13 : vector<2x1024xi32>
    %c16_i32 = arith.constant 16 : i32
    %15 = vector.broadcast %c16_i32 : i32 to vector<2x1024xi32>
    %16 = arith.shrsi %14, %15 : vector<2x1024xi32>
    %c65535_i32 = arith.constant 65535 : i32
    %17 = vector.broadcast %c65535_i32 : i32 to vector<2x1024xi32>
    %18 = arith.andi %16, %17 : vector<2x1024xi32>
    %19 = arith.xori %14, %18 : vector<2x1024xi32>
    %c-2048144789_i32 = arith.constant -2048144789 : i32
    %20 = vector.broadcast %c-2048144789_i32 : i32 to vector<2x1024xi32>
    %21 = arith.muli %19, %20 : vector<2x1024xi32>
    %c13_i32 = arith.constant 13 : i32
    %22 = vector.broadcast %c13_i32 : i32 to vector<2x1024xi32>
    %23 = arith.shrsi %21, %22 : vector<2x1024xi32>
    %c524287_i32 = arith.constant 524287 : i32
    %24 = vector.broadcast %c524287_i32 : i32 to vector<2x1024xi32>
    %25 = arith.andi %23, %24 : vector<2x1024xi32>
    %26 = arith.xori %21, %25 : vector<2x1024xi32>
    %c-1028477387_i32 = arith.constant -1028477387 : i32
    %27 = vector.broadcast %c-1028477387_i32 : i32 to vector<2x1024xi32>
    %28 = arith.muli %26, %27 : vector<2x1024xi32>
    %c16_i32_1 = arith.constant 16 : i32
    %29 = vector.broadcast %c16_i32_1 : i32 to vector<2x1024xi32>
    %30 = arith.shrsi %28, %29 : vector<2x1024xi32>
    %c65535_i32_2 = arith.constant 65535 : i32
    %31 = vector.broadcast %c65535_i32_2 : i32 to vector<2x1024xi32>
    %32 = arith.andi %30, %31 : vector<2x1024xi32>
    %33 = arith.xori %28, %32 : vector<2x1024xi32>
    %c65535_i32_3 = arith.constant 65535 : i32
    %34 = vector.broadcast %c65535_i32_3 : i32 to vector<2x1024xi32>
    %35 = arith.andi %33, %34 : vector<2x1024xi32>
    %36 = arith.sitofp %35 : vector<2x1024xi32> to vector<2x1024xf32>
    %c16_i32_4 = arith.constant 16 : i32
    %37 = vector.broadcast %c16_i32_4 : i32 to vector<2x1024xi32>
    %38 = arith.shrsi %33, %37 : vector<2x1024xi32>
    %c65535_i32_5 = arith.constant 65535 : i32
    %39 = vector.broadcast %c65535_i32_5 : i32 to vector<2x1024xi32>
    %40 = arith.andi %38, %39 : vector<2x1024xi32>
    %41 = arith.sitofp %40 : vector<2x1024xi32> to vector<2x1024xf32>
    %42 = arith.addf %12, %36 : vector<2x1024xf32>
    %43 = arith.addf %42, %41 : vector<2x1024xf32>
    %c-626627285_i32 = arith.constant -626627285 : i32
    %44 = vector.broadcast %c-626627285_i32 : i32 to vector<2x1024xi32>
    %45 = arith.addi %11, %44 : vector<2x1024xi32>
    %c16_i32_6 = arith.constant 16 : i32
    %46 = vector.broadcast %c16_i32_6 : i32 to vector<2x1024xi32>
    %47 = arith.shrsi %45, %46 : vector<2x1024xi32>
    %c65535_i32_7 = arith.constant 65535 : i32
    %48 = vector.broadcast %c65535_i32_7 : i32 to vector<2x1024xi32>
    %49 = arith.andi %47, %48 : vector<2x1024xi32>
    %50 = arith.xori %45, %49 : vector<2x1024xi32>
    %c-2048144789_i32_8 = arith.constant -2048144789 : i32
    %51 = vector.broadcast %c-2048144789_i32_8 : i32 to vector<2x1024xi32>
    %52 = arith.muli %50, %51 : vector<2x1024xi32>
    %c13_i32_9 = arith.constant 13 : i32
    %53 = vector.broadcast %c13_i32_9 : i32 to vector<2x1024xi32>
    %54 = arith.shrsi %52, %53 : vector<2x1024xi32>
    %c524287_i32_10 = arith.constant 524287 : i32
    %55 = vector.broadcast %c524287_i32_10 : i32 to vector<2x1024xi32>
    %56 = arith.andi %54, %55 : vector<2x1024xi32>
    %57 = arith.xori %52, %56 : vector<2x1024xi32>
    %c-1028477387_i32_11 = arith.constant -1028477387 : i32
    %58 = vector.broadcast %c-1028477387_i32_11 : i32 to vector<2x1024xi32>
    %59 = arith.muli %57, %58 : vector<2x1024xi32>
    %c16_i32_12 = arith.constant 16 : i32
    %60 = vector.broadcast %c16_i32_12 : i32 to vector<2x1024xi32>
    %61 = arith.shrsi %59, %60 : vector<2x1024xi32>
    %c65535_i32_13 = arith.constant 65535 : i32
    %62 = vector.broadcast %c65535_i32_13 : i32 to vector<2x1024xi32>
    %63 = arith.andi %61, %62 : vector<2x1024xi32>
    %64 = arith.xori %59, %63 : vector<2x1024xi32>
    %c65535_i32_14 = arith.constant 65535 : i32
    %65 = vector.broadcast %c65535_i32_14 : i32 to vector<2x1024xi32>
    %66 = arith.andi %64, %65 : vector<2x1024xi32>
    %67 = arith.sitofp %66 : vector<2x1024xi32> to vector<2x1024xf32>
    %c16_i32_15 = arith.constant 16 : i32
    %68 = vector.broadcast %c16_i32_15 : i32 to vector<2x1024xi32>
    %69 = arith.shrsi %64, %68 : vector<2x1024xi32>
    %c65535_i32_16 = arith.constant 65535 : i32
    %70 = vector.broadcast %c65535_i32_16 : i32 to vector<2x1024xi32>
    %71 = arith.andi %69, %70 : vector<2x1024xi32>
    %72 = arith.sitofp %71 : vector<2x1024xi32> to vector<2x1024xf32>
    %73 = arith.addf %43, %67 : vector<2x1024xf32>
    %74 = arith.addf %73, %72 : vector<2x1024xf32>
    %c387276957_i32 = arith.constant 387276957 : i32
    %75 = vector.broadcast %c387276957_i32 : i32 to vector<2x1024xi32>
    %76 = arith.addi %11, %75 : vector<2x1024xi32>
    %c16_i32_17 = arith.constant 16 : i32
    %77 = vector.broadcast %c16_i32_17 : i32 to vector<2x1024xi32>
    %78 = arith.shrsi %76, %77 : vector<2x1024xi32>
    %c65535_i32_18 = arith.constant 65535 : i32
    %79 = vector.broadcast %c65535_i32_18 : i32 to vector<2x1024xi32>
    %80 = arith.andi %78, %79 : vector<2x1024xi32>
    %81 = arith.xori %76, %80 : vector<2x1024xi32>
    %c-2048144789_i32_19 = arith.constant -2048144789 : i32
    %82 = vector.broadcast %c-2048144789_i32_19 : i32 to vector<2x1024xi32>
    %83 = arith.muli %81, %82 : vector<2x1024xi32>
    %c13_i32_20 = arith.constant 13 : i32
    %84 = vector.broadcast %c13_i32_20 : i32 to vector<2x1024xi32>
    %85 = arith.shrsi %83, %84 : vector<2x1024xi32>
    %c524287_i32_21 = arith.constant 524287 : i32
    %86 = vector.broadcast %c524287_i32_21 : i32 to vector<2x1024xi32>
    %87 = arith.andi %85, %86 : vector<2x1024xi32>
    %88 = arith.xori %83, %87 : vector<2x1024xi32>
    %c-1028477387_i32_22 = arith.constant -1028477387 : i32
    %89 = vector.broadcast %c-1028477387_i32_22 : i32 to vector<2x1024xi32>
    %90 = arith.muli %88, %89 : vector<2x1024xi32>
    %c16_i32_23 = arith.constant 16 : i32
    %91 = vector.broadcast %c16_i32_23 : i32 to vector<2x1024xi32>
    %92 = arith.shrsi %90, %91 : vector<2x1024xi32>
    %c65535_i32_24 = arith.constant 65535 : i32
    %93 = vector.broadcast %c65535_i32_24 : i32 to vector<2x1024xi32>
    %94 = arith.andi %92, %93 : vector<2x1024xi32>
    %95 = arith.xori %90, %94 : vector<2x1024xi32>
    %c65535_i32_25 = arith.constant 65535 : i32
    %96 = vector.broadcast %c65535_i32_25 : i32 to vector<2x1024xi32>
    %97 = arith.andi %95, %96 : vector<2x1024xi32>
    %98 = arith.sitofp %97 : vector<2x1024xi32> to vector<2x1024xf32>
    %c16_i32_26 = arith.constant 16 : i32
    %99 = vector.broadcast %c16_i32_26 : i32 to vector<2x1024xi32>
    %100 = arith.shrsi %95, %99 : vector<2x1024xi32>
    %c65535_i32_27 = arith.constant 65535 : i32
    %101 = vector.broadcast %c65535_i32_27 : i32 to vector<2x1024xi32>
    %102 = arith.andi %100, %101 : vector<2x1024xi32>
    %103 = arith.sitofp %102 : vector<2x1024xi32> to vector<2x1024xf32>
    %104 = arith.addf %74, %98 : vector<2x1024xf32>
    %105 = arith.addf %104, %103 : vector<2x1024xf32>
    %c1401181199_i32 = arith.constant 1401181199 : i32
    %106 = vector.broadcast %c1401181199_i32 : i32 to vector<2x1024xi32>
    %107 = arith.addi %11, %106 : vector<2x1024xi32>
    %c16_i32_28 = arith.constant 16 : i32
    %108 = vector.broadcast %c16_i32_28 : i32 to vector<2x1024xi32>
    %109 = arith.shrsi %107, %108 : vector<2x1024xi32>
    %c65535_i32_29 = arith.constant 65535 : i32
    %110 = vector.broadcast %c65535_i32_29 : i32 to vector<2x1024xi32>
    %111 = arith.andi %109, %110 : vector<2x1024xi32>
    %112 = arith.xori %107, %111 : vector<2x1024xi32>
    %c-2048144789_i32_30 = arith.constant -2048144789 : i32
    %113 = vector.broadcast %c-2048144789_i32_30 : i32 to vector<2x1024xi32>
    %114 = arith.muli %112, %113 : vector<2x1024xi32>
    %c13_i32_31 = arith.constant 13 : i32
    %115 = vector.broadcast %c13_i32_31 : i32 to vector<2x1024xi32>
    %116 = arith.shrsi %114, %115 : vector<2x1024xi32>
    %c524287_i32_32 = arith.constant 524287 : i32
    %117 = vector.broadcast %c524287_i32_32 : i32 to vector<2x1024xi32>
    %118 = arith.andi %116, %117 : vector<2x1024xi32>
    %119 = arith.xori %114, %118 : vector<2x1024xi32>
    %c-1028477387_i32_33 = arith.constant -1028477387 : i32
    %120 = vector.broadcast %c-1028477387_i32_33 : i32 to vector<2x1024xi32>
    %121 = arith.muli %119, %120 : vector<2x1024xi32>
    %c16_i32_34 = arith.constant 16 : i32
    %122 = vector.broadcast %c16_i32_34 : i32 to vector<2x1024xi32>
    %123 = arith.shrsi %121, %122 : vector<2x1024xi32>
    %c65535_i32_35 = arith.constant 65535 : i32
    %124 = vector.broadcast %c65535_i32_35 : i32 to vector<2x1024xi32>
    %125 = arith.andi %123, %124 : vector<2x1024xi32>
    %126 = arith.xori %121, %125 : vector<2x1024xi32>
    %c65535_i32_36 = arith.constant 65535 : i32
    %127 = vector.broadcast %c65535_i32_36 : i32 to vector<2x1024xi32>
    %128 = arith.andi %126, %127 : vector<2x1024xi32>
    %129 = arith.sitofp %128 : vector<2x1024xi32> to vector<2x1024xf32>
    %c16_i32_37 = arith.constant 16 : i32
    %130 = vector.broadcast %c16_i32_37 : i32 to vector<2x1024xi32>
    %131 = arith.shrsi %126, %130 : vector<2x1024xi32>
    %c65535_i32_38 = arith.constant 65535 : i32
    %132 = vector.broadcast %c65535_i32_38 : i32 to vector<2x1024xi32>
    %133 = arith.andi %131, %132 : vector<2x1024xi32>
    %134 = arith.sitofp %133 : vector<2x1024xi32> to vector<2x1024xf32>
    %135 = arith.addf %105, %129 : vector<2x1024xf32>
    %136 = arith.addf %135, %134 : vector<2x1024xf32>
    %c-1879881855_i32 = arith.constant -1879881855 : i32
    %137 = vector.broadcast %c-1879881855_i32 : i32 to vector<2x1024xi32>
    %138 = arith.addi %11, %137 : vector<2x1024xi32>
    %c16_i32_39 = arith.constant 16 : i32
    %139 = vector.broadcast %c16_i32_39 : i32 to vector<2x1024xi32>
    %140 = arith.shrsi %138, %139 : vector<2x1024xi32>
    %c65535_i32_40 = arith.constant 65535 : i32
    %141 = vector.broadcast %c65535_i32_40 : i32 to vector<2x1024xi32>
    %142 = arith.andi %140, %141 : vector<2x1024xi32>
    %143 = arith.xori %138, %142 : vector<2x1024xi32>
    %c-2048144789_i32_41 = arith.constant -2048144789 : i32
    %144 = vector.broadcast %c-2048144789_i32_41 : i32 to vector<2x1024xi32>
    %145 = arith.muli %143, %144 : vector<2x1024xi32>
    %c13_i32_42 = arith.constant 13 : i32
    %146 = vector.broadcast %c13_i32_42 : i32 to vector<2x1024xi32>
    %147 = arith.shrsi %145, %146 : vector<2x1024xi32>
    %c524287_i32_43 = arith.constant 524287 : i32
    %148 = vector.broadcast %c524287_i32_43 : i32 to vector<2x1024xi32>
    %149 = arith.andi %147, %148 : vector<2x1024xi32>
    %150 = arith.xori %145, %149 : vector<2x1024xi32>
    %c-1028477387_i32_44 = arith.constant -1028477387 : i32
    %151 = vector.broadcast %c-1028477387_i32_44 : i32 to vector<2x1024xi32>
    %152 = arith.muli %150, %151 : vector<2x1024xi32>
    %c16_i32_45 = arith.constant 16 : i32
    %153 = vector.broadcast %c16_i32_45 : i32 to vector<2x1024xi32>
    %154 = arith.shrsi %152, %153 : vector<2x1024xi32>
    %c65535_i32_46 = arith.constant 65535 : i32
    %155 = vector.broadcast %c65535_i32_46 : i32 to vector<2x1024xi32>
    %156 = arith.andi %154, %155 : vector<2x1024xi32>
    %157 = arith.xori %152, %156 : vector<2x1024xi32>
    %c65535_i32_47 = arith.constant 65535 : i32
    %158 = vector.broadcast %c65535_i32_47 : i32 to vector<2x1024xi32>
    %159 = arith.andi %157, %158 : vector<2x1024xi32>
    %160 = arith.sitofp %159 : vector<2x1024xi32> to vector<2x1024xf32>
    %c16_i32_48 = arith.constant 16 : i32
    %161 = vector.broadcast %c16_i32_48 : i32 to vector<2x1024xi32>
    %162 = arith.shrsi %157, %161 : vector<2x1024xi32>
    %c65535_i32_49 = arith.constant 65535 : i32
    %163 = vector.broadcast %c65535_i32_49 : i32 to vector<2x1024xi32>
    %164 = arith.andi %162, %163 : vector<2x1024xi32>
    %165 = arith.sitofp %164 : vector<2x1024xi32> to vector<2x1024xf32>
    %166 = arith.addf %136, %160 : vector<2x1024xf32>
    %167 = arith.addf %166, %165 : vector<2x1024xf32>
    %c-865977613_i32 = arith.constant -865977613 : i32
    %168 = vector.broadcast %c-865977613_i32 : i32 to vector<2x1024xi32>
    %169 = arith.addi %11, %168 : vector<2x1024xi32>
    %c16_i32_50 = arith.constant 16 : i32
    %170 = vector.broadcast %c16_i32_50 : i32 to vector<2x1024xi32>
    %171 = arith.shrsi %169, %170 : vector<2x1024xi32>
    %c65535_i32_51 = arith.constant 65535 : i32
    %172 = vector.broadcast %c65535_i32_51 : i32 to vector<2x1024xi32>
    %173 = arith.andi %171, %172 : vector<2x1024xi32>
    %174 = arith.xori %169, %173 : vector<2x1024xi32>
    %c-2048144789_i32_52 = arith.constant -2048144789 : i32
    %175 = vector.broadcast %c-2048144789_i32_52 : i32 to vector<2x1024xi32>
    %176 = arith.muli %174, %175 : vector<2x1024xi32>
    %c13_i32_53 = arith.constant 13 : i32
    %177 = vector.broadcast %c13_i32_53 : i32 to vector<2x1024xi32>
    %178 = arith.shrsi %176, %177 : vector<2x1024xi32>
    %c524287_i32_54 = arith.constant 524287 : i32
    %179 = vector.broadcast %c524287_i32_54 : i32 to vector<2x1024xi32>
    %180 = arith.andi %178, %179 : vector<2x1024xi32>
    %181 = arith.xori %176, %180 : vector<2x1024xi32>
    %c-1028477387_i32_55 = arith.constant -1028477387 : i32
    %182 = vector.broadcast %c-1028477387_i32_55 : i32 to vector<2x1024xi32>
    %183 = arith.muli %181, %182 : vector<2x1024xi32>
    %c16_i32_56 = arith.constant 16 : i32
    %184 = vector.broadcast %c16_i32_56 : i32 to vector<2x1024xi32>
    %185 = arith.shrsi %183, %184 : vector<2x1024xi32>
    %c65535_i32_57 = arith.constant 65535 : i32
    %186 = vector.broadcast %c65535_i32_57 : i32 to vector<2x1024xi32>
    %187 = arith.andi %185, %186 : vector<2x1024xi32>
    %188 = arith.xori %183, %187 : vector<2x1024xi32>
    %c65535_i32_58 = arith.constant 65535 : i32
    %189 = vector.broadcast %c65535_i32_58 : i32 to vector<2x1024xi32>
    %190 = arith.andi %188, %189 : vector<2x1024xi32>
    %191 = arith.sitofp %190 : vector<2x1024xi32> to vector<2x1024xf32>
    %c16_i32_59 = arith.constant 16 : i32
    %192 = vector.broadcast %c16_i32_59 : i32 to vector<2x1024xi32>
    %193 = arith.shrsi %188, %192 : vector<2x1024xi32>
    %c65535_i32_60 = arith.constant 65535 : i32
    %194 = vector.broadcast %c65535_i32_60 : i32 to vector<2x1024xi32>
    %195 = arith.andi %193, %194 : vector<2x1024xi32>
    %196 = arith.sitofp %195 : vector<2x1024xi32> to vector<2x1024xf32>
    %197 = arith.addf %167, %191 : vector<2x1024xf32>
    %198 = arith.addf %197, %196 : vector<2x1024xf32>
    %cst_61 = arith.constant 6.000000e+00 : f32
    %199 = vector.broadcast %cst_61 : f32 to vector<2x1024xf32>
    %200 = arith.addf %198, %199 : vector<2x1024xf32>
    %cst_62 = arith.constant 1.52587891E-5 : f32
    %201 = vector.broadcast %cst_62 : f32 to vector<2x1024xf32>
    %202 = arith.mulf %200, %201 : vector<2x1024xf32>
    %cst_63 = arith.constant 6.000000e+00 : f32
    %203 = vector.broadcast %cst_63 : f32 to vector<2x1024xf32>
    %204 = arith.subf %202, %203 : vector<2x1024xf32>
    %c0_64 = arith.constant 0 : index
    %c0_65 = arith.constant 0 : index
    %205 = vector.load %arg2[%c0_64, %c0_65] : memref<2x1024xf32, #tpu.memory_space<vmem>>, vector<2x1024xf32>
    %cst_66 = arith.constant 1.000000e-01 : f32
    %206 = vector.broadcast %cst_66 : f32 to vector<2x1024xf32>
    %207 = arith.mulf %206, %204 : vector<2x1024xf32>
    %208 = arith.addf %205, %207 : vector<2x1024xf32>
    %c0_67 = arith.constant 0 : index
    %c0_68 = arith.constant 0 : index
    %209 = vector.load %arg3[%c0_67, %c0_68] : memref<2x1024xf32, #tpu.memory_space<vmem>>, vector<2x1024xf32>
    tpu.vector_store %arg3[%c0_67, %c0_68], %208 {strides = array<i32>} : memref<2x1024xf32, #tpu.memory_space<vmem>>, vector<2x1024xf32>,
    return
  }
  func.func @transform_0(%arg0: i32, %arg1: memref<1xi32, #tpu.memory_space<smem>>) -> (i32, i32) {
    %c0_i32 = arith.constant 0 : i32
    %c0_i32_0 = arith.constant 0 : i32
    return %arg0, %c0_i32 : i32, i32
  }
  func.func @transform_1(%arg0: i32, %arg1: memref<1xi32, #tpu.memory_space<smem>>) -> (i32, i32) {
    %c0_i32 = arith.constant 0 : i32
    %c0_i32_0 = arith.constant 0 : i32
    return %arg0, %c0_i32 : i32, i32
  }
}

</mosaic_0001>

<llo_original>
// kernel: tpu_custom_call.1
$region0: #{tpu_custom_call.1}
  #allocation0 [shape = 'u32[]', space=smem, size = 0x4, offset = 0x4, fixed_abs, tag = 'smem constant byte address 0x4 - core index']
  #allocation1 [shape = 'u32[144,128]{1,0:T(1,128)}', space=vmem, size = 0x12000, scoped, tag = 'internal scratch']
  #allocation2 [shape = 's32[1]{0}', space=sflag, size = 0x4, scoped, tag = 'scoped memory for tpu_custom_call.1']
  #allocation3 [shape = 's32[1]{0:T(128)S(6)}', space=smem, size = 0x200, scoped, tag = 'prefetched SMEM operand 0']
  %s0 = inlined_call_operand.<no memory space> [shape: s32[1], index: 0, kind: input, shape index: {}]
  %s1 = inlined_call_operand.hbm [shape: f32[2,1024], index: 1, kind: input, shape index: {}]
  %s2 = inlined_call_operand.hbm [shape: f32[2,1024], index: 2, kind: output, shape index: {}]
  %s3 = sld [smem:[#allocation0]]
  $region18: #{tpu_custom_call.1} parent=0
    _
  %s5 = ssub.s32 1, %s3
  %s6 = scalar_select 0, %s5, %s3
  %7 = sst [smem:[#allocation3]] %s0
  $region1: #{tpu_custom_call.1} parent=0
    #allocation4 [shape = 'u8[8192]{0}', space=vmem, size = 0x2000, scoped, tag = 'input window, operand 1, single buffered']
    #allocation5 [shape = 's32[1]{0}', space=sflag, size = 0x4, scoped, tag = 'scoped memory for tpu_custom_call.1']
    #allocation6 [shape = 's32[1]{0}', space=sflag, size = 0x4, scoped, tag = 'scoped memory for tpu_custom_call.1']
    #allocation7 [shape = 'u8[8192]{0}', space=vmem, size = 0x2000, scoped, tag = 'output window, operand 0, single buffered']
    %8 = vsyncpa [#allocation5], 0
    %9 = vsyncpa [#allocation6], 0
    // Predicated region
    $region2: #{tpu_custom_call.1} parent=1 // pred_check
      _
    $region3: #{tpu_custom_call.1} parent=1 // pred_check_branch
      %11 = sbr.rel (0) target = $region5
    $region4: #{tpu_custom_call.1} parent=1 // pred_region
      %s13 = ssub.s32 256, 256
      %14 = vsyncadd [#allocation5], %s13
      %s16 = sshll.u32 [#allocation4], 4
      %s17 = int_to_ptr.vmem [resolvable:$true] %s16
      %19 = dma.hbm_to_vmem [thread:$0]  %s1, 256, %s17, [#allocation5]
    $region5: #{tpu_custom_call.1} parent=1 // pred_fallthru
      _
    // Predicated region
    $region6: #{tpu_custom_call.1} parent=1 // pred_check
      _
    $region7: #{tpu_custom_call.1} parent=1 // pred_check_branch
      %21 = sbr.rel (0) target = $region9
    $region8: #{tpu_custom_call.1} parent=1 // pred_region
      %22 = dma.done [#allocation5], 256
    $region9: #{tpu_custom_call.1} parent=1 // pred_fallthru
      _
    %s23 = sld [smem:[#allocation3]]
    %v24 = vlaneseq
    %v25 = vshrl.u32 %v24, 7
    %v26 = vlaneseq
    %v27 = vand.u32 %v26, 127
    %v28 = vadd.s32 %v27, 128
    %v29 = vadd.s32 %v27, 256
    %v30 = vadd.s32 %v27, 384
    %v31 = vadd.s32 %v27, 512
    %v32 = vadd.s32 %v27, 640
    %v33 = vadd.s32 %v27, 768
    %v34 = vadd.s32 %v27, 896
    %s35 = smul.u32 0, 2
    %v36 = vstv %s35
    %v37 = vadd.s32 %v36, %v25
    %v38 = vmul.u32 %v37, 1024
    %v39 = vadd.s32 %v38, %v27
    %v40 = vadd.s32 %v38, %v28
    %v41 = vadd.s32 %v38, %v29
    %v42 = vadd.s32 %v38, %v30
    %v43 = vadd.s32 %v38, %v31
    %v44 = vadd.s32 %v38, %v32
    %v45 = vadd.s32 %v38, %v33
    %v46 = vadd.s32 %v38, %v34
    %s47 = smul.u32 %s23, 2654435769
    %v48 = vstv %s47
    %v49 = vadd.s32 %v39, %v48
    %v50 = vadd.s32 %v40, %v48
    %v51 = vadd.s32 %v41, %v48
    %v52 = vadd.s32 %v42, %v48
    %v53 = vadd.s32 %v43, %v48
    %v54 = vadd.s32 %v44, %v48
    %v55 = vadd.s32 %v45, %v48
    %v56 = vadd.s32 %v46, %v48
    %v57 = vadd.s32 %v49, 2654435769
    %v58 = vadd.s32 %v50, 2654435769
    %v59 = vadd.s32 %v51, 2654435769
    %v60 = vadd.s32 %v52, 2654435769
    %v61 = vadd.s32 %v53, 2654435769
    %v62 = vadd.s32 %v54, 2654435769
    %v63 = vadd.s32 %v55, 2654435769
    %v64 = vadd.s32 %v56, 2654435769
    %v65 = vshra.s32 %v57, 16
    %v66 = vshra.s32 %v58, 16
    %v67 = vshra.s32 %v59, 16
    %v68 = vshra.s32 %v60, 16
    %v69 = vshra.s32 %v61, 16
    %v70 = vshra.s32 %v62, 16
    %v71 = vshra.s32 %v63, 16
    %v72 = vshra.s32 %v64, 16
    %v73 = vand.u32 %v65, 65535
    %v74 = vand.u32 %v66, 65535
    %v75 = vand.u32 %v67, 65535
    %v76 = vand.u32 %v68, 65535
    %v77 = vand.u32 %v69, 65535
    %v78 = vand.u32 %v70, 65535
    %v79 = vand.u32 %v71, 65535
    %v80 = vand.u32 %v72, 65535
    %v81 = vxor.u32 %v57, %v73
    %v82 = vxor.u32 %v58, %v74
    %v83 = vxor.u32 %v59, %v75
    %v84 = vxor.u32 %v60, %v76
    %v85 = vxor.u32 %v61, %v77
    %v86 = vxor.u32 %v62, %v78
    %v87 = vxor.u32 %v63, %v79
    %v88 = vxor.u32 %v64, %v80
    %v89 = vmul.u32 %v81, 2246822507
    %v90 = vmul.u32 %v82, 2246822507
    %v91 = vmul.u32 %v83, 2246822507
    %v92 = vmul.u32 %v84, 2246822507
    %v93 = vmul.u32 %v85, 2246822507
    %v94 = vmul.u32 %v86, 2246822507
    %v95 = vmul.u32 %v87, 2246822507
    %v96 = vmul.u32 %v88, 2246822507
    %v97 = vshra.s32 %v89, 13
    %v98 = vshra.s32 %v90, 13
    %v99 = vshra.s32 %v91, 13
    %v100 = vshra.s32 %v92, 13
    %v101 = vshra.s32 %v93, 13
    %v102 = vshra.s32 %v94, 13
    %v103 = vshra.s32 %v95, 13
    %v104 = vshra.s32 %v96, 13
    %v105 = vand.u32 %v97, 524287
    %v106 = vand.u32 %v98, 524287
    %v107 = vand.u32 %v99, 524287
    %v108 = vand.u32 %v100, 524287
    %v109 = vand.u32 %v101, 524287
    %v110 = vand.u32 %v102, 524287
    %v111 = vand.u32 %v103, 524287
    %v112 = vand.u32 %v104, 524287
    %v113 = vxor.u32 %v89, %v105
    %v114 = vxor.u32 %v90, %v106
    %v115 = vxor.u32 %v91, %v107
    %v116 = vxor.u32 %v92, %v108
    %v117 = vxor.u32 %v93, %v109
    %v118 = vxor.u32 %v94, %v110
    %v119 = vxor.u32 %v95, %v111
    %v120 = vxor.u32 %v96, %v112
    %v121 = vmul.u32 %v113, 3266489909
    %v122 = vmul.u32 %v114, 3266489909
    %v123 = vmul.u32 %v115, 3266489909
    %v124 = vmul.u32 %v116, 3266489909
    %v125 = vmul.u32 %v117, 3266489909
    %v126 = vmul.u32 %v118, 3266489909
    %v127 = vmul.u32 %v119, 3266489909
    %v128 = vmul.u32 %v120, 3266489909
    %v129 = vshra.s32 %v121, 16
    %v130 = vshra.s32 %v122, 16
    %v131 = vshra.s32 %v123, 16
    %v132 = vshra.s32 %v124, 16
    %v133 = vshra.s32 %v125, 16
    %v134 = vshra.s32 %v126, 16
    %v135 = vshra.s32 %v127, 16
    %v136 = vshra.s32 %v128, 16
    %v137 = vand.u32 %v129, 65535
    %v138 = vand.u32 %v130, 65535
    %v139 = vand.u32 %v131, 65535
    %v140 = vand.u32 %v132, 65535
    %v141 = vand.u32 %v133, 65535
    %v142 = vand.u32 %v134, 65535
    %v143 = vand.u32 %v135, 65535
    %v144 = vand.u32 %v136, 65535
    %v145 = vxor.u32 %v121, %v137
    %v146 = vxor.u32 %v122, %v138
    %v147 = vxor.u32 %v123, %v139
    %v148 = vxor.u32 %v124, %v140
    %v149 = vxor.u32 %v125, %v141
    %v150 = vxor.u32 %v126, %v142
    %v151 = vxor.u32 %v127, %v143
    %v152 = vxor.u32 %v128, %v144
    %v153 = vand.u32 %v145, 65535
    %v154 = vand.u32 %v146, 65535
    %v155 = vand.u32 %v147, 65535
    %v156 = vand.u32 %v148, 65535
    %v157 = vand.u32 %v149, 65535
    %v158 = vand.u32 %v150, 65535
    %v159 = vand.u32 %v151, 65535
    %v160 = vand.u32 %v152, 65535
    %v161 = vcvt.s32.f32 %v153
    %v162 = vcvt.s32.f32 %v154
    %v163 = vcvt.s32.f32 %v155
    %v164 = vcvt.s32.f32 %v156
    %v165 = vcvt.s32.f32 %v157
    %v166 = vcvt.s32.f32 %v158
    %v167 = vcvt.s32.f32 %v159
    %v168 = vcvt.s32.f32 %v160
    %v169 = vshra.s32 %v145, 16
    %v170 = vshra.s32 %v146, 16
    %v171 = vshra.s32 %v147, 16
    %v172 = vshra.s32 %v148, 16
    %v173 = vshra.s32 %v149, 16
    %v174 = vshra.s32 %v150, 16
    %v175 = vshra.s32 %v151, 16
    %v176 = vshra.s32 %v152, 16
    %v177 = vand.u32 %v169, 65535
    %v178 = vand.u32 %v170, 65535
    %v179 = vand.u32 %v171, 65535
    %v180 = vand.u32 %v172, 65535
    %v181 = vand.u32 %v173, 65535
    %v182 = vand.u32 %v174, 65535
    %v183 = vand.u32 %v175, 65535
    %v184 = vand.u32 %v176, 65535
    %v185 = vcvt.s32.f32 %v177
    %v186 = vcvt.s32.f32 %v178
    %v187 = vcvt.s32.f32 %v179
    %v188 = vcvt.s32.f32 %v180
    %v189 = vcvt.s32.f32 %v181
    %v190 = vcvt.s32.f32 %v182
    %v191 = vcvt.s32.f32 %v183
    %v192 = vcvt.s32.f32 %v184
    %v193 = vadd.f32 %v161, 0.0
    %v194 = vadd.f32 %v162, 0.0
    %v195 = vadd.f32 %v163, 0.0
    %v196 = vadd.f32 %v164, 0.0
    %v197 = vadd.f32 %v165, 0.0
    %v198 = vadd.f32 %v166, 0.0
    %v199 = vadd.f32 %v167, 0.0
    %v200 = vadd.f32 %v168, 0.0
    %v201 = vadd.f32 %v193, %v185
    %v202 = vadd.f32 %v194, %v186
    %v203 = vadd.f32 %v195, %v187
    %v204 = vadd.f32 %v196, %v188
    %v205 = vadd.f32 %v197, %v189
    %v206 = vadd.f32 %v198, %v190
    %v207 = vadd.f32 %v199, %v191
    %v208 = vadd.f32 %v200, %v192
    %v209 = vadd.s32 %v49, 3668340011
    %v210 = vadd.s32 %v50, 3668340011
    %v211 = vadd.s32 %v51, 3668340011
    %v212 = vadd.s32 %v52, 3668340011
    %v213 = vadd.s32 %v53, 3668340011
    %v214 = vadd.s32 %v54, 3668340011
    %v215 = vadd.s32 %v55, 3668340011
    %v216 = vadd.s32 %v56, 3668340011
    %v217 = vshra.s32 %v209, 16
    %v218 = vshra.s32 %v210, 16
    %v219 = vshra.s32 %v211, 16
    %v220 = vshra.s32 %v212, 16
    %v221 = vshra.s32 %v213, 16
    %v222 = vshra.s32 %v214, 16
    %v223 = vshra.s32 %v215, 16
    %v224 = vshra.s32 %v216, 16
    %v225 = vand.u32 %v217, 65535
    %v226 = vand.u32 %v218, 65535
    %v227 = vand.u32 %v219, 65535
    %v228 = vand.u32 %v220, 65535
    %v229 = vand.u32 %v221, 65535
    %v230 = vand.u32 %v222, 65535
    %v231 = vand.u32 %v223, 65535
    %v232 = vand.u32 %v224, 65535
    %v233 = vxor.u32 %v209, %v225
    %v234 = vxor.u32 %v210, %v226
    %v235 = vxor.u32 %v211, %v227
    %v236 = vxor.u32 %v212, %v228
    %v237 = vxor.u32 %v213, %v229
    %v238 = vxor.u32 %v214, %v230
    %v239 = vxor.u32 %v215, %v231
    %v240 = vxor.u32 %v216, %v232
    %v241 = vmul.u32 %v233, 2246822507
    %v242 = vmul.u32 %v234, 2246822507
    %v243 = vmul.u32 %v235, 2246822507
    %v244 = vmul.u32 %v236, 2246822507
    %v245 = vmul.u32 %v237, 2246822507
    %v246 = vmul.u32 %v238, 2246822507
    %v247 = vmul.u32 %v239, 2246822507
    %v248 = vmul.u32 %v240, 2246822507
    %v249 = vshra.s32 %v241, 13
    %v250 = vshra.s32 %v242, 13
    %v251 = vshra.s32 %v243, 13
    %v252 = vshra.s32 %v244, 13
    %v253 = vshra.s32 %v245, 13
    %v254 = vshra.s32 %v246, 13
    %v255 = vshra.s32 %v247, 13
    %v256 = vshra.s32 %v248, 13
    %v257 = vand.u32 %v249, 524287
    %v258 = vand.u32 %v250, 524287
    %v259 = vand.u32 %v251, 524287
    %v260 = vand.u32 %v252, 524287
    %v261 = vand.u32 %v253, 524287
    %v262 = vand.u32 %v254, 524287
    %v263 = vand.u32 %v255, 524287
    %v264 = vand.u32 %v256, 524287
    %v265 = vxor.u32 %v241, %v257
    %v266 = vxor.u32 %v242, %v258
    %v267 = vxor.u32 %v243, %v259
    %v268 = vxor.u32 %v244, %v260
    %v269 = vxor.u32 %v245, %v261
    %v270 = vxor.u32 %v246, %v262
    %v271 = vxor.u32 %v247, %v263
    %v272 = vxor.u32 %v248, %v264
    %v273 = vmul.u32 %v265, 3266489909
    %v274 = vmul.u32 %v266, 3266489909
    %v275 = vmul.u32 %v267, 3266489909
    %v276 = vmul.u32 %v268, 3266489909
    %v277 = vmul.u32 %v269, 3266489909
    %v278 = vmul.u32 %v270, 3266489909
    %v279 = vmul.u32 %v271, 3266489909
    %v280 = vmul.u32 %v272, 3266489909
    %v281 = vshra.s32 %v273, 16
    %v282 = vshra.s32 %v274, 16
    %v283 = vshra.s32 %v275, 16
    %v284 = vshra.s32 %v276, 16
    %v285 = vshra.s32 %v277, 16
    %v286 = vshra.s32 %v278, 16
    %v287 = vshra.s32 %v279, 16
    %v288 = vshra.s32 %v280, 16
    %v289 = vand.u32 %v281, 65535
    %v290 = vand.u32 %v282, 65535
    %v291 = vand.u32 %v283, 65535
    %v292 = vand.u32 %v284, 65535
    %v293 = vand.u32 %v285, 65535
    %v294 = vand.u32 %v286, 65535
    %v295 = vand.u32 %v287, 65535
    %v296 = vand.u32 %v288, 65535
    %v297 = vxor.u32 %v273, %v289
    %v298 = vxor.u32 %v274, %v290
    %v299 = vxor.u32 %v275, %v291
    %v300 = vxor.u32 %v276, %v292
    %v301 = vxor.u32 %v277, %v293
    %v302 = vxor.u32 %v278, %v294
    %v303 = vxor.u32 %v279, %v295
    %v304 = vxor.u32 %v280, %v296
    %v305 = vand.u32 %v297, 65535
    %v306 = vand.u32 %v298, 65535
    %v307 = vand.u32 %v299, 65535
    %v308 = vand.u32 %v300, 65535
    %v309 = vand.u32 %v301, 65535
    %v310 = vand.u32 %v302, 65535
    %v311 = vand.u32 %v303, 65535
    %v312 = vand.u32 %v304, 65535
    %v313 = vcvt.s32.f32 %v305
    %v314 = vcvt.s32.f32 %v306
    %v315 = vcvt.s32.f32 %v307
    %v316 = vcvt.s32.f32 %v308
    %v317 = vcvt.s32.f32 %v309
    %v318 = vcvt.s32.f32 %v310
    %v319 = vcvt.s32.f32 %v311
    %v320 = vcvt.s32.f32 %v312
    %v321 = vshra.s32 %v297, 16
    %v322 = vshra.s32 %v298, 16
    %v323 = vshra.s32 %v299, 16
    %v324 = vshra.s32 %v300, 16
    %v325 = vshra.s32 %v301, 16
    %v326 = vshra.s32 %v302, 16
    %v327 = vshra.s32 %v303, 16
    %v328 = vshra.s32 %v304, 16
    %v329 = vand.u32 %v321, 65535
    %v330 = vand.u32 %v322, 65535
    %v331 = vand.u32 %v323, 65535
    %v332 = vand.u32 %v324, 65535
    %v333 = vand.u32 %v325, 65535
    %v334 = vand.u32 %v326, 65535
    %v335 = vand.u32 %v327, 65535
    %v336 = vand.u32 %v328, 65535
    %v337 = vcvt.s32.f32 %v329
    %v338 = vcvt.s32.f32 %v330
    %v339 = vcvt.s32.f32 %v331
    %v340 = vcvt.s32.f32 %v332
    %v341 = vcvt.s32.f32 %v333
    %v342 = vcvt.s32.f32 %v334
    %v343 = vcvt.s32.f32 %v335
    %v344 = vcvt.s32.f32 %v336
    %v345 = vadd.f32 %v201, %v313
    %v346 = vadd.f32 %v202, %v314
    %v347 = vadd.f32 %v203, %v315
    %v348 = vadd.f32 %v204, %v316
    %v349 = vadd.f32 %v205, %v317
    %v350 = vadd.f32 %v206, %v318
    %v351 = vadd.f32 %v207, %v319
    %v352 = vadd.f32 %v208, %v320
    %v353 = vadd.f32 %v345, %v337
    %v354 = vadd.f32 %v346, %v338
    %v355 = vadd.f32 %v347, %v339
    %v356 = vadd.f32 %v348, %v340
    %v357 = vadd.f32 %v349, %v341
    %v358 = vadd.f32 %v350, %v342
    %v359 = vadd.f32 %v351, %v343
    %v360 = vadd.f32 %v352, %v344
    %v361 = vadd.s32 %v49, 387276957
    %v362 = vadd.s32 %v50, 387276957
    %v363 = vadd.s32 %v51, 387276957
    %v364 = vadd.s32 %v52, 387276957
    %v365 = vadd.s32 %v53, 387276957
    %v366 = vadd.s32 %v54, 387276957
    %v367 = vadd.s32 %v55, 387276957
    %v368 = vadd.s32 %v56, 387276957
    %v369 = vshra.s32 %v361, 16
    %v370 = vshra.s32 %v362, 16
    %v371 = vshra.s32 %v363, 16
    %v372 = vshra.s32 %v364, 16
    %v373 = vshra.s32 %v365, 16
    %v374 = vshra.s32 %v366, 16
    %v375 = vshra.s32 %v367, 16
    %v376 = vshra.s32 %v368, 16
    %v377 = vand.u32 %v369, 65535
    %v378 = vand.u32 %v370, 65535
    %v379 = vand.u32 %v371, 65535
    %v380 = vand.u32 %v372, 65535
    %v381 = vand.u32 %v373, 65535
    %v382 = vand.u32 %v374, 65535
    %v383 = vand.u32 %v375, 65535
    %v384 = vand.u32 %v376, 65535
    %v385 = vxor.u32 %v361, %v377
    %v386 = vxor.u32 %v362, %v378
    %v387 = vxor.u32 %v363, %v379
    %v388 = vxor.u32 %v364, %v380
    %v389 = vxor.u32 %v365, %v381
    %v390 = vxor.u32 %v366, %v382
    %v391 = vxor.u32 %v367, %v383
    %v392 = vxor.u32 %v368, %v384
    %v393 = vmul.u32 %v385, 2246822507
    %v394 = vmul.u32 %v386, 2246822507
    %v395 = vmul.u32 %v387, 2246822507
    %v396 = vmul.u32 %v388, 2246822507
    %v397 = vmul.u32 %v389, 2246822507
    %v398 = vmul.u32 %v390, 2246822507
    %v399 = vmul.u32 %v391, 2246822507
    %v400 = vmul.u32 %v392, 2246822507
    %v401 = vshra.s32 %v393, 13
    %v402 = vshra.s32 %v394, 13
    %v403 = vshra.s32 %v395, 13
    %v404 = vshra.s32 %v396, 13
    %v405 = vshra.s32 %v397, 13
    %v406 = vshra.s32 %v398, 13
    %v407 = vshra.s32 %v399, 13
    %v408 = vshra.s32 %v400, 13
    %v409 = vand.u32 %v401, 524287
    %v410 = vand.u32 %v402, 524287
    %v411 = vand.u32 %v403, 524287
    %v412 = vand.u32 %v404, 524287
    %v413 = vand.u32 %v405, 524287
    %v414 = vand.u32 %v406, 524287
    %v415 = vand.u32 %v407, 524287
    %v416 = vand.u32 %v408, 524287
    %v417 = vxor.u32 %v393, %v409
    %v418 = vxor.u32 %v394, %v410
    %v419 = vxor.u32 %v395, %v411
    %v420 = vxor.u32 %v396, %v412
    %v421 = vxor.u32 %v397, %v413
    %v422 = vxor.u32 %v398, %v414
    %v423 = vxor.u32 %v399, %v415
    %v424 = vxor.u32 %v400, %v416
    %v425 = vmul.u32 %v417, 3266489909
    %v426 = vmul.u32 %v418, 3266489909
    %v427 = vmul.u32 %v419, 3266489909
    %v428 = vmul.u32 %v420, 3266489909
    %v429 = vmul.u32 %v421, 3266489909
    %v430 = vmul.u32 %v422, 3266489909
    %v431 = vmul.u32 %v423, 3266489909
    %v432 = vmul.u32 %v424, 3266489909
    %v433 = vshra.s32 %v425, 16
    %v434 = vshra.s32 %v426, 16
    %v435 = vshra.s32 %v427, 16
    %v436 = vshra.s32 %v428, 16
    %v437 = vshra.s32 %v429, 16
    %v438 = vshra.s32 %v430, 16
    %v439 = vshra.s32 %v431, 16
    %v440 = vshra.s32 %v432, 16
    %v441 = vand.u32 %v433, 65535
    %v442 = vand.u32 %v434, 65535
    %v443 = vand.u32 %v435, 65535
    %v444 = vand.u32 %v436, 65535
    %v445 = vand.u32 %v437, 65535
    %v446 = vand.u32 %v438, 65535
    %v447 = vand.u32 %v439, 65535
    %v448 = vand.u32 %v440, 65535
    %v449 = vxor.u32 %v425, %v441
    %v450 = vxor.u32 %v426, %v442
    %v451 = vxor.u32 %v427, %v443
    %v452 = vxor.u32 %v428, %v444
    %v453 = vxor.u32 %v429, %v445
    %v454 = vxor.u32 %v430, %v446
    %v455 = vxor.u32 %v431, %v447
    %v456 = vxor.u32 %v432, %v448
    %v457 = vand.u32 %v449, 65535
    %v458 = vand.u32 %v450, 65535
    %v459 = vand.u32 %v451, 65535
    %v460 = vand.u32 %v452, 65535
    %v461 = vand.u32 %v453, 65535
    %v462 = vand.u32 %v454, 65535
    %v463 = vand.u32 %v455, 65535
    %v464 = vand.u32 %v456, 65535
    %v465 = vcvt.s32.f32 %v457
    %v466 = vcvt.s32.f32 %v458
    %v467 = vcvt.s32.f32 %v459
    %v468 = vcvt.s32.f32 %v460
    %v469 = vcvt.s32.f32 %v461
    %v470 = vcvt.s32.f32 %v462
    %v471 = vcvt.s32.f32 %v463
    %v472 = vcvt.s32.f32 %v464
    %v473 = vshra.s32 %v449, 16
    %v474 = vshra.s32 %v450, 16
    %v475 = vshra.s32 %v451, 16
    %v476 = vshra.s32 %v452, 16
    %v477 = vshra.s32 %v453, 16
    %v478 = vshra.s32 %v454, 16
    %v479 = vshra.s32 %v455, 16
    %v480 = vshra.s32 %v456, 16
    %v481 = vand.u32 %v473, 65535
    %v482 = vand.u32 %v474, 65535
    %v483 = vand.u32 %v475, 65535
    %v484 = vand.u32 %v476, 65535
    %v485 = vand.u32 %v477, 65535
    %v486 = vand.u32 %v478, 65535
    %v487 = vand.u32 %v479, 65535
    %v488 = vand.u32 %v480, 65535
    %v489 = vcvt.s32.f32 %v481
    %v490 = vcvt.s32.f32 %v482
    %v491 = vcvt.s32.f32 %v483
    %v492 = vcvt.s32.f32 %v484
    %v493 = vcvt.s32.f32 %v485
    %v494 = vcvt.s32.f32 %v486
    %v495 = vcvt.s32.f32 %v487
    %v496 = vcvt.s32.f32 %v488
    %v497 = vadd.f32 %v353, %v465
    %v498 = vadd.f32 %v354, %v466
    %v499 = vadd.f32 %v355, %v467
    %v500 = vadd.f32 %v356, %v468
    %v501 = vadd.f32 %v357, %v469
    %v502 = vadd.f32 %v358, %v470
    %v503 = vadd.f32 %v359, %v471
    %v504 = vadd.f32 %v360, %v472
    %v505 = vadd.f32 %v497, %v489
    %v506 = vadd.f32 %v498, %v490
    %v507 = vadd.f32 %v499, %v491
    %v508 = vadd.f32 %v500, %v492
    %v509 = vadd.f32 %v501, %v493
    %v510 = vadd.f32 %v502, %v494
    %v511 = vadd.f32 %v503, %v495
    %v512 = vadd.f32 %v504, %v496
    %v513 = vadd.s32 %v49, 1401181199
    %v514 = vadd.s32 %v50, 1401181199
    %v515 = vadd.s32 %v51, 1401181199
    %v516 = vadd.s32 %v52, 1401181199
    %v517 = vadd.s32 %v53, 1401181199
    %v518 = vadd.s32 %v54, 1401181199
    %v519 = vadd.s32 %v55, 1401181199
    %v520 = vadd.s32 %v56, 1401181199
    %v521 = vshra.s32 %v513, 16
    %v522 = vshra.s32 %v514, 16
    %v523 = vshra.s32 %v515, 16
    %v524 = vshra.s32 %v516, 16
    %v525 = vshra.s32 %v517, 16
    %v526 = vshra.s32 %v518, 16
    %v527 = vshra.s32 %v519, 16
    %v528 = vshra.s32 %v520, 16
    %v529 = vand.u32 %v521, 65535
    %v530 = vand.u32 %v522, 65535
    %v531 = vand.u32 %v523, 65535
    %v532 = vand.u32 %v524, 65535
    %v533 = vand.u32 %v525, 65535
    %v534 = vand.u32 %v526, 65535
    %v535 = vand.u32 %v527, 65535
    %v536 = vand.u32 %v528, 65535
    %v537 = vxor.u32 %v513, %v529
    %v538 = vxor.u32 %v514, %v530
    %v539 = vxor.u32 %v515, %v531
    %v540 = vxor.u32 %v516, %v532
    %v541 = vxor.u32 %v517, %v533
    %v542 = vxor.u32 %v518, %v534
    %v543 = vxor.u32 %v519, %v535
    %v544 = vxor.u32 %v520, %v536
    %v545 = vmul.u32 %v537, 2246822507
    %v546 = vmul.u32 %v538, 2246822507
    %v547 = vmul.u32 %v539, 2246822507
    %v548 = vmul.u32 %v540, 2246822507
    %v549 = vmul.u32 %v541, 2246822507
    %v550 = vmul.u32 %v542, 2246822507
    %v551 = vmul.u32 %v543, 2246822507
    %v552 = vmul.u32 %v544, 2246822507
    %v553 = vshra.s32 %v545, 13
    %v554 = vshra.s32 %v546, 13
    %v555 = vshra.s32 %v547, 13
    %v556 = vshra.s32 %v548, 13
    %v557 = vshra.s32 %v549, 13
    %v558 = vshra.s32 %v550, 13
    %v559 = vshra.s32 %v551, 13
    %v560 = vshra.s32 %v552, 13
    %v561 = vand.u32 %v553, 524287
    %v562 = vand.u32 %v554, 524287
    %v563 = vand.u32 %v555, 524287
    %v564 = vand.u32 %v556, 524287
    %v565 = vand.u32 %v557, 524287
    %v566 = vand.u32 %v558, 524287
    %v567 = vand.u32 %v559, 524287
    %v568 = vand.u32 %v560, 524287
    %v569 = vxor.u32 %v545, %v561
    %v570 = vxor.u32 %v546, %v562
    %v571 = vxor.u32 %v547, %v563
    %v572 = vxor.u32 %v548, %v564
    %v573 = vxor.u32 %v549, %v565
    %v574 = vxor.u32 %v550, %v566
    %v575 = vxor.u32 %v551, %v567
    %v576 = vxor.u32 %v552, %v568
    %v577 = vmul.u32 %v569, 3266489909
    %v578 = vmul.u32 %v570, 3266489909
    %v579 = vmul.u32 %v571, 3266489909
    %v580 = vmul.u32 %v572, 3266489909
    %v581 = vmul.u32 %v573, 3266489909
    %v582 = vmul.u32 %v574, 3266489909
    %v583 = vmul.u32 %v575, 3266489909
    %v584 = vmul.u32 %v576, 3266489909
    %v585 = vshra.s32 %v577, 16
    %v586 = vshra.s32 %v578, 16
    %v587 = vshra.s32 %v579, 16
    %v588 = vshra.s32 %v580, 16
    %v589 = vshra.s32 %v581, 16
    %v590 = vshra.s32 %v582, 16
    %v591 = vshra.s32 %v583, 16
    %v592 = vshra.s32 %v584, 16
    %v593 = vand.u32 %v585, 65535
    %v594 = vand.u32 %v586, 65535
    %v595 = vand.u32 %v587, 65535
    %v596 = vand.u32 %v588, 65535
    %v597 = vand.u32 %v589, 65535
    %v598 = vand.u32 %v590, 65535
    %v599 = vand.u32 %v591, 65535
    %v600 = vand.u32 %v592, 65535
    %v601 = vxor.u32 %v577, %v593
    %v602 = vxor.u32 %v578, %v594
    %v603 = vxor.u32 %v579, %v595
    %v604 = vxor.u32 %v580, %v596
    %v605 = vxor.u32 %v581, %v597
    %v606 = vxor.u32 %v582, %v598
    %v607 = vxor.u32 %v583, %v599
    %v608 = vxor.u32 %v584, %v600
    %v609 = vand.u32 %v601, 65535
    %v610 = vand.u32 %v602, 65535
    %v611 = vand.u32 %v603, 65535
    %v612 = vand.u32 %v604, 65535
    %v613 = vand.u32 %v605, 65535
    %v614 = vand.u32 %v606, 65535
    %v615 = vand.u32 %v607, 65535
    %v616 = vand.u32 %v608, 65535
    %v617 = vcvt.s32.f32 %v609
    %v618 = vcvt.s32.f32 %v610
    %v619 = vcvt.s32.f32 %v611
    %v620 = vcvt.s32.f32 %v612
    %v621 = vcvt.s32.f32 %v613
    %v622 = vcvt.s32.f32 %v614
    %v623 = vcvt.s32.f32 %v615
    %v624 = vcvt.s32.f32 %v616
    %v625 = vshra.s32 %v601, 16
    %v626 = vshra.s32 %v602, 16
    %v627 = vshra.s32 %v603, 16
    %v628 = vshra.s32 %v604, 16
    %v629 = vshra.s32 %v605, 16
    %v630 = vshra.s32 %v606, 16
    %v631 = vshra.s32 %v607, 16
    %v632 = vshra.s32 %v608, 16
    %v633 = vand.u32 %v625, 65535
    %v634 = vand.u32 %v626, 65535
    %v635 = vand.u32 %v627, 65535
    %v636 = vand.u32 %v628, 65535
    %v637 = vand.u32 %v629, 65535
    %v638 = vand.u32 %v630, 65535
    %v639 = vand.u32 %v631, 65535
    %v640 = vand.u32 %v632, 65535
    %v641 = vcvt.s32.f32 %v633
    %v642 = vcvt.s32.f32 %v634
    %v643 = vcvt.s32.f32 %v635
    %v644 = vcvt.s32.f32 %v636
    %v645 = vcvt.s32.f32 %v637
    %v646 = vcvt.s32.f32 %v638
    %v647 = vcvt.s32.f32 %v639
    %v648 = vcvt.s32.f32 %v640
    %v649 = vadd.f32 %v505, %v617
    %v650 = vadd.f32 %v506, %v618
    %v651 = vadd.f32 %v507, %v619
    %v652 = vadd.f32 %v508, %v620
    %v653 = vadd.f32 %v509, %v621
    %v654 = vadd.f32 %v510, %v622
    %v655 = vadd.f32 %v511, %v623
    %v656 = vadd.f32 %v512, %v624
    %v657 = vadd.f32 %v649, %v641
    %v658 = vadd.f32 %v650, %v642
    %v659 = vadd.f32 %v651, %v643
    %v660 = vadd.f32 %v652, %v644
    %v661 = vadd.f32 %v653, %v645
    %v662 = vadd.f32 %v654, %v646
    %v663 = vadd.f32 %v655, %v647
    %v664 = vadd.f32 %v656, %v648
    %v665 = vadd.s32 %v49, 2415085441
    %v666 = vadd.s32 %v50, 2415085441
    %v667 = vadd.s32 %v51, 2415085441
    %v668 = vadd.s32 %v52, 2415085441
    %v669 = vadd.s32 %v53, 2415085441
    %v670 = vadd.s32 %v54, 2415085441
    %v671 = vadd.s32 %v55, 2415085441
    %v672 = vadd.s32 %v56, 2415085441
    %v673 = vshra.s32 %v665, 16
    %v674 = vshra.s32 %v666, 16
    %v675 = vshra.s32 %v667, 16
    %v676 = vshra.s32 %v668, 16
    %v677 = vshra.s32 %v669, 16
    %v678 = vshra.s32 %v670, 16
    %v679 = vshra.s32 %v671, 16
    %v680 = vshra.s32 %v672, 16
    %v681 = vand.u32 %v673, 65535
    %v682 = vand.u32 %v674, 65535
    %v683 = vand.u32 %v675, 65535
    %v684 = vand.u32 %v676, 65535
    %v685 = vand.u32 %v677, 65535
    %v686 = vand.u32 %v678, 65535
    %v687 = vand.u32 %v679, 65535
    %v688 = vand.u32 %v680, 65535
    %v689 = vxor.u32 %v665, %v681
    %v690 = vxor.u32 %v666, %v682
    %v691 = vxor.u32 %v667, %v683
    %v692 = vxor.u32 %v668, %v684
    %v693 = vxor.u32 %v669, %v685
    %v694 = vxor.u32 %v670, %v686
    %v695 = vxor.u32 %v671, %v687
    %v696 = vxor.u32 %v672, %v688
    %v697 = vmul.u32 %v689, 2246822507
    %v698 = vmul.u32 %v690, 2246822507
    %v699 = vmul.u32 %v691, 2246822507
    %v700 = vmul.u32 %v692, 2246822507
    %v701 = vmul.u32 %v693, 2246822507
    %v702 = vmul.u32 %v694, 2246822507
    %v703 = vmul.u32 %v695, 2246822507
    %v704 = vmul.u32 %v696, 2246822507
    %v705 = vshra.s32 %v697, 13
    %v706 = vshra.s32 %v698, 13
    %v707 = vshra.s32 %v699, 13
    %v708 = vshra.s32 %v700, 13
    %v709 = vshra.s32 %v701, 13
    %v710 = vshra.s32 %v702, 13
    %v711 = vshra.s32 %v703, 13
    %v712 = vshra.s32 %v704, 13
    %v713 = vand.u32 %v705, 524287
    %v714 = vand.u32 %v706, 524287
    %v715 = vand.u32 %v707, 524287
    %v716 = vand.u32 %v708, 524287
    %v717 = vand.u32 %v709, 524287
    %v718 = vand.u32 %v710, 524287
    %v719 = vand.u32 %v711, 524287
    %v720 = vand.u32 %v712, 524287
    %v721 = vxor.u32 %v697, %v713
    %v722 = vxor.u32 %v698, %v714
    %v723 = vxor.u32 %v699, %v715
    %v724 = vxor.u32 %v700, %v716
    %v725 = vxor.u32 %v701, %v717
    %v726 = vxor.u32 %v702, %v718
    %v727 = vxor.u32 %v703, %v719
    %v728 = vxor.u32 %v704, %v720
    %v729 = vmul.u32 %v721, 3266489909
    %v730 = vmul.u32 %v722, 3266489909
    %v731 = vmul.u32 %v723, 3266489909
    %v732 = vmul.u32 %v724, 3266489909
    %v733 = vmul.u32 %v725, 3266489909
    %v734 = vmul.u32 %v726, 3266489909
    %v735 = vmul.u32 %v727, 3266489909
    %v736 = vmul.u32 %v728, 3266489909
    %v737 = vshra.s32 %v729, 16
    %v738 = vshra.s32 %v730, 16
    %v739 = vshra.s32 %v731, 16
    %v740 = vshra.s32 %v732, 16
    %v741 = vshra.s32 %v733, 16
    %v742 = vshra.s32 %v734, 16
    %v743 = vshra.s32 %v735, 16
    %v744 = vshra.s32 %v736, 16
    %v745 = vand.u32 %v737, 65535
    %v746 = vand.u32 %v738, 65535
    %v747 = vand.u32 %v739, 65535
    %v748 = vand.u32 %v740, 65535
    %v749 = vand.u32 %v741, 65535
    %v750 = vand.u32 %v742, 65535
    %v751 = vand.u32 %v743, 65535
    %v752 = vand.u32 %v744, 65535
    %v753 = vxor.u32 %v729, %v745
    %v754 = vxor.u32 %v730, %v746
    %v755 = vxor.u32 %v731, %v747
    %v756 = vxor.u32 %v732, %v748
    %v757 = vxor.u32 %v733, %v749
    %v758 = vxor.u32 %v734, %v750
    %v759 = vxor.u32 %v735, %v751
    %v760 = vxor.u32 %v736, %v752
    %v761 = vand.u32 %v753, 65535
    %v762 = vand.u32 %v754, 65535
    %v763 = vand.u32 %v755, 65535
    %v764 = vand.u32 %v756, 65535
    %v765 = vand.u32 %v757, 65535
    %v766 = vand.u32 %v758, 65535
    %v767 = vand.u32 %v759, 65535
    %v768 = vand.u32 %v760, 65535
    %v769 = vcvt.s32.f32 %v761
    %v770 = vcvt.s32.f32 %v762
    %v771 = vcvt.s32.f32 %v763
    %v772 = vcvt.s32.f32 %v764
    %v773 = vcvt.s32.f32 %v765
    %v774 = vcvt.s32.f32 %v766
    %v775 = vcvt.s32.f32 %v767
    %v776 = vcvt.s32.f32 %v768
    %v777 = vshra.s32 %v753, 16
    %v778 = vshra.s32 %v754, 16
    %v779 = vshra.s32 %v755, 16
    %v780 = vshra.s32 %v756, 16
    %v781 = vshra.s32 %v757, 16
    %v782 = vshra.s32 %v758, 16
    %v783 = vshra.s32 %v759, 16
    %v784 = vshra.s32 %v760, 16
    %v785 = vand.u32 %v777, 65535
    %v786 = vand.u32 %v778, 65535
    %v787 = vand.u32 %v779, 65535
    %v788 = vand.u32 %v780, 65535
    %v789 = vand.u32 %v781, 65535
    %v790 = vand.u32 %v782, 65535
    %v791 = vand.u32 %v783, 65535
    %v792 = vand.u32 %v784, 65535
    %v793 = vcvt.s32.f32 %v785
    %v794 = vcvt.s32.f32 %v786
    %v795 = vcvt.s32.f32 %v787
    %v796 = vcvt.s32.f32 %v788
    %v797 = vcvt.s32.f32 %v789
    %v798 = vcvt.s32.f32 %v790
    %v799 = vcvt.s32.f32 %v791
    %v800 = vcvt.s32.f32 %v792
    %v801 = vadd.f32 %v657, %v769
    %v802 = vadd.f32 %v658, %v770
    %v803 = vadd.f32 %v659, %v771
    %v804 = vadd.f32 %v660, %v772
    %v805 = vadd.f32 %v661, %v773
    %v806 = vadd.f32 %v662, %v774
    %v807 = vadd.f32 %v663, %v775
    %v808 = vadd.f32 %v664, %v776
    %v809 = vadd.f32 %v801, %v793
    %v810 = vadd.f32 %v802, %v794
    %v811 = vadd.f32 %v803, %v795
    %v812 = vadd.f32 %v804, %v796
    %v813 = vadd.f32 %v805, %v797
    %v814 = vadd.f32 %v806, %v798
    %v815 = vadd.f32 %v807, %v799
    %v816 = vadd.f32 %v808, %v800
    %v817 = vadd.s32 %v49, 3428989683
    %v818 = vadd.s32 %v50, 3428989683
    %v819 = vadd.s32 %v51, 3428989683
    %v820 = vadd.s32 %v52, 3428989683
    %v821 = vadd.s32 %v53, 3428989683
    %v822 = vadd.s32 %v54, 3428989683
    %v823 = vadd.s32 %v55, 3428989683
    %v824 = vadd.s32 %v56, 3428989683
    %v825 = vshra.s32 %v817, 16
    %v826 = vshra.s32 %v818, 16
    %v827 = vshra.s32 %v819, 16
    %v828 = vshra.s32 %v820, 16
    %v829 = vshra.s32 %v821, 16
    %v830 = vshra.s32 %v822, 16
    %v831 = vshra.s32 %v823, 16
    %v832 = vshra.s32 %v824, 16
    %v833 = vand.u32 %v825, 65535
    %v834 = vand.u32 %v826, 65535
    %v835 = vand.u32 %v827, 65535
    %v836 = vand.u32 %v828, 65535
    %v837 = vand.u32 %v829, 65535
    %v838 = vand.u32 %v830, 65535
    %v839 = vand.u32 %v831, 65535
    %v840 = vand.u32 %v832, 65535
    %v841 = vxor.u32 %v817, %v833
    %v842 = vxor.u32 %v818, %v834
    %v843 = vxor.u32 %v819, %v835
    %v844 = vxor.u32 %v820, %v836
    %v845 = vxor.u32 %v821, %v837
    %v846 = vxor.u32 %v822, %v838
    %v847 = vxor.u32 %v823, %v839
    %v848 = vxor.u32 %v824, %v840
    %v849 = vmul.u32 %v841, 2246822507
    %v850 = vmul.u32 %v842, 2246822507
    %v851 = vmul.u32 %v843, 2246822507
    %v852 = vmul.u32 %v844, 2246822507
    %v853 = vmul.u32 %v845, 2246822507
    %v854 = vmul.u32 %v846, 2246822507
    %v855 = vmul.u32 %v847, 2246822507
    %v856 = vmul.u32 %v848, 2246822507
    %v857 = vshra.s32 %v849, 13
    %v858 = vshra.s32 %v850, 13
    %v859 = vshra.s32 %v851, 13
    %v860 = vshra.s32 %v852, 13
    %v861 = vshra.s32 %v853, 13
    %v862 = vshra.s32 %v854, 13
    %v863 = vshra.s32 %v855, 13
    %v864 = vshra.s32 %v856, 13
    %v865 = vand.u32 %v857, 524287
    %v866 = vand.u32 %v858, 524287
    %v867 = vand.u32 %v859, 524287
    %v868 = vand.u32 %v860, 524287
    %v869 = vand.u32 %v861, 524287
    %v870 = vand.u32 %v862, 524287
    %v871 = vand.u32 %v863, 524287
    %v872 = vand.u32 %v864, 524287
    %v873 = vxor.u32 %v849, %v865
    %v874 = vxor.u32 %v850, %v866
    %v875 = vxor.u32 %v851, %v867
    %v876 = vxor.u32 %v852, %v868
    %v877 = vxor.u32 %v853, %v869
    %v878 = vxor.u32 %v854, %v870
    %v879 = vxor.u32 %v855, %v871
    %v880 = vxor.u32 %v856, %v872
    %v881 = vmul.u32 %v873, 3266489909
    %v882 = vmul.u32 %v874, 3266489909
    %v883 = vmul.u32 %v875, 3266489909
    %v884 = vmul.u32 %v876, 3266489909
    %v885 = vmul.u32 %v877, 3266489909
    %v886 = vmul.u32 %v878, 3266489909
    %v887 = vmul.u32 %v879, 3266489909
    %v888 = vmul.u32 %v880, 3266489909
    %v889 = vshra.s32 %v881, 16
    %v890 = vshra.s32 %v882, 16
    %v891 = vshra.s32 %v883, 16
    %v892 = vshra.s32 %v884, 16
    %v893 = vshra.s32 %v885, 16
    %v894 = vshra.s32 %v886, 16
    %v895 = vshra.s32 %v887, 16
    %v896 = vshra.s32 %v888, 16
    %v897 = vand.u32 %v889, 65535
    %v898 = vand.u32 %v890, 65535
    %v899 = vand.u32 %v891, 65535
    %v900 = vand.u32 %v892, 65535
    %v901 = vand.u32 %v893, 65535
    %v902 = vand.u32 %v894, 65535
    %v903 = vand.u32 %v895, 65535
    %v904 = vand.u32 %v896, 65535
    %v905 = vxor.u32 %v881, %v897
    %v906 = vxor.u32 %v882, %v898
    %v907 = vxor.u32 %v883, %v899
    %v908 = vxor.u32 %v884, %v900
    %v909 = vxor.u32 %v885, %v901
    %v910 = vxor.u32 %v886, %v902
    %v911 = vxor.u32 %v887, %v903
    %v912 = vxor.u32 %v888, %v904
    %v913 = vand.u32 %v905, 65535
    %v914 = vand.u32 %v906, 65535
    %v915 = vand.u32 %v907, 65535
    %v916 = vand.u32 %v908, 65535
    %v917 = vand.u32 %v909, 65535
    %v918 = vand.u32 %v910, 65535
    %v919 = vand.u32 %v911, 65535
    %v920 = vand.u32 %v912, 65535
    %v921 = vcvt.s32.f32 %v913
    %v922 = vcvt.s32.f32 %v914
    %v923 = vcvt.s32.f32 %v915
    %v924 = vcvt.s32.f32 %v916
    %v925 = vcvt.s32.f32 %v917
    %v926 = vcvt.s32.f32 %v918
    %v927 = vcvt.s32.f32 %v919
    %v928 = vcvt.s32.f32 %v920
    %v929 = vshra.s32 %v905, 16
    %v930 = vshra.s32 %v906, 16
    %v931 = vshra.s32 %v907, 16
    %v932 = vshra.s32 %v908, 16
    %v933 = vshra.s32 %v909, 16
    %v934 = vshra.s32 %v910, 16
    %v935 = vshra.s32 %v911, 16
    %v936 = vshra.s32 %v912, 16
    %v937 = vand.u32 %v929, 65535
    %v938 = vand.u32 %v930, 65535
    %v939 = vand.u32 %v931, 65535
    %v940 = vand.u32 %v932, 65535
    %v941 = vand.u32 %v933, 65535
    %v942 = vand.u32 %v934, 65535
    %v943 = vand.u32 %v935, 65535
    %v944 = vand.u32 %v936, 65535
    %v945 = vcvt.s32.f32 %v937
    %v946 = vcvt.s32.f32 %v938
    %v947 = vcvt.s32.f32 %v939
    %v948 = vcvt.s32.f32 %v940
    %v949 = vcvt.s32.f32 %v941
    %v950 = vcvt.s32.f32 %v942
    %v951 = vcvt.s32.f32 %v943
    %v952 = vcvt.s32.f32 %v944
    %v953 = vadd.f32 %v809, %v921
    %v954 = vadd.f32 %v810, %v922
    %v955 = vadd.f32 %v811, %v923
    %v956 = vadd.f32 %v812, %v924
    %v957 = vadd.f32 %v813, %v925
    %v958 = vadd.f32 %v814, %v926
    %v959 = vadd.f32 %v815, %v927
    %v960 = vadd.f32 %v816, %v928
    %v961 = vadd.f32 %v953, %v945
    %v962 = vadd.f32 %v954, %v946
    %v963 = vadd.f32 %v955, %v947
    %v964 = vadd.f32 %v956, %v948
    %v965 = vadd.f32 %v957, %v949
    %v966 = vadd.f32 %v958, %v950
    %v967 = vadd.f32 %v959, %v951
    %v968 = vadd.f32 %v960, %v952
    %v969 = vadd.f32 %v961, 6.0
    %v970 = vadd.f32 %v962, 6.0
    %v971 = vadd.f32 %v963, 6.0
    %v972 = vadd.f32 %v964, 6.0
    %v973 = vadd.f32 %v965, 6.0
    %v974 = vadd.f32 %v966, 6.0
    %v975 = vadd.f32 %v967, 6.0
    %v976 = vadd.f32 %v968, 6.0
    %v977 = vmul.f32 %v969, 1.5258789e-05
    %v978 = vmul.f32 %v970, 1.5258789e-05
    %v979 = vmul.f32 %v971, 1.5258789e-05
    %v980 = vmul.f32 %v972, 1.5258789e-05
    %v981 = vmul.f32 %v973, 1.5258789e-05
    %v982 = vmul.f32 %v974, 1.5258789e-05
    %v983 = vmul.f32 %v975, 1.5258789e-05
    %v984 = vmul.f32 %v976, 1.5258789e-05
    %v985 = vsub.f32 %v977, 6.0
    %v986 = vsub.f32 %v978, 6.0
    %v987 = vsub.f32 %v979, 6.0
    %v988 = vsub.f32 %v980, 6.0
    %v989 = vsub.f32 %v981, 6.0
    %v990 = vsub.f32 %v982, 6.0
    %v991 = vsub.f32 %v983, 6.0
    %v992 = vsub.f32 %v984, 6.0
    %v993 = vld [vmem:[#allocation4] sm:$0xff]
    %v994 = vld [vmem:[#allocation4 + $0x8] sm:$0xff]
    %v995 = vmul.f32 %v985, 0.1
    %v996 = vmul.f32 %v986, 0.1
    %v997 = vmul.f32 %v987, 0.1
    %v998 = vmul.f32 %v988, 0.1
    %v999 = vmul.f32 %v989, 0.1
    %v1000 = vmul.f32 %v990, 0.1
    %v1001 = vmul.f32 %v991, 0.1
    %v1002 = vmul.f32 %v992, 0.1
    %v1011 = vcombine.low %v995, %v996
    %v1012 = vcombine.low %v997, %v998
    %v1014 = vunpack.c.l.s4 1983009808
    %v1015 = vunpack.c.0.s8 %v1014
    %v1016 = vlaneseq
    %v1017 = vshrl.u32 %v1016, 7
    %v1018 = vsub.s32 %v1015, %v1017
    %v1019 = vrot.slane %v1011, %v1018
    %v1021 = vunpack.c.l.s4 1983009808
    %v1022 = vunpack.c.0.s8 %v1021
    %v1023 = vlaneseq
    %v1024 = vshrl.u32 %v1023, 7
    %v1025 = vsub.s32 %v1022, %v1024
    %v1026 = vrot.slane %v1012, %v1025
    %v1027 = vcombine.low %v1019, %v1026
    %v1028 = vcombine.low %v999, %v1000
    %v1029 = vcombine.low %v1001, %v1002
    %v1031 = vunpack.c.l.s4 1983009808
    %v1032 = vunpack.c.0.s8 %v1031
    %v1033 = vlaneseq
    %v1034 = vshrl.u32 %v1033, 7
    %v1035 = vsub.s32 %v1032, %v1034
    %v1036 = vrot.slane %v1028, %v1035
    %v1038 = vunpack.c.l.s4 1983009808
    %v1039 = vunpack.c.0.s8 %v1038
    %v1040 = vlaneseq
    %v1041 = vshrl.u32 %v1040, 7
    %v1042 = vsub.s32 %v1039, %v1041
    %v1043 = vrot.slane %v1029, %v1042
    %v1044 = vcombine.low %v1036, %v1043
    %v1047 = vadd.f32 %v993, %v1027
    %v1048 = vadd.f32 %v994, %v1044
    %1049 = vst [vmem:[#allocation7] sm:$0xff] %v1047
    %1050 = vst [vmem:[#allocation7 + $0x8] sm:$0xff] %v1048
    // Predicated region
    $region10: #{tpu_custom_call.1} parent=1 // pred_check
      _
    $region11: #{tpu_custom_call.1} parent=1 // pred_check_branch
      %1052 = sbr.rel (0) target = $region13
    $region12: #{tpu_custom_call.1} parent=1 // pred_region
      %s1054 = ssub.s32 256, 256
      %1055 = vsyncadd [#allocation6], %s1054
      %s1057 = sshll.u32 [#allocation7], 4
      %s1058 = int_to_ptr.vmem [resolvable:$true] %s1057
      %1060 = dma.vmem_to_hbm [thread:$0]  %s1058, 256, %s2, [#allocation6]
    $region13: #{tpu_custom_call.1} parent=1 // pred_fallthru
      _
    // Predicated region
    $region14: #{tpu_custom_call.1} parent=1 // pred_check
      _
    $region15: #{tpu_custom_call.1} parent=1 // pred_check_branch
      %1062 = sbr.rel (0) target = $region17
    $region16: #{tpu_custom_call.1} parent=1 // pred_region
      %1063 = dma.done [#allocation6], 256
    $region17: #{tpu_custom_call.1} parent=1 // pred_fallthru
      _
    %1064 = vsyncpa [#allocation5], 1
    %1065 = vsyncpa [#allocation6], 1

</llo_original>
